<compile_context>
chip_gen: v5e
topology: v5e:2x2
jax: 0.10.0
libtpu: 0.0.40
codegen_flags: <defaults>
</compile_context>

<pallas_src>
import jax
import jax.numpy as jnp
from jax import lax
from jax.experimental import pallas as pl
from jax.experimental.pallas import tpu as pltpu


def _gcn_kernel(w_ref, bias_ref, alpha_ref, seq_ref, adj_ref, out_ref, fts_ref):
    # w_ref:    (out_ft, in_ft)          -- resident (constant index map)
    # bias_ref: (1, out_ft)              -- resident
    # alpha_ref:(1, 1) SMEM scalar       -- PReLU slope
    # seq_ref:  (1, N, in_ft)            -- same block for every row tile
    # adj_ref:  (1, tn, N)
    # out_ref:  (1, tn, out_ft)
    # fts_ref:  (N, out_ft) VMEM scratch -- carried across the row-tile axis

    @pl.when(pl.program_id(1) == 0)
    def _():
        # seq_fts = seq @ W^T, contracting in_ft directly (no W transpose).
        fts = lax.dot_general(
            seq_ref[0], w_ref[...],
            dimension_numbers=(((1,), (1,)), ((), ())),
            preferred_element_type=jnp.float32)
        fts_ref[...] = fts.astype(fts_ref.dtype)

    # adj row tile @ seq_fts on the MXU, f32 accumulation.
    out = jnp.dot(adj_ref[0], fts_ref[...],
                  preferred_element_type=jnp.float32)          # (tn, out_ft)
    out = out + bias_ref[...].astype(jnp.float32)              # broadcast (1, out_ft)
    alpha = alpha_ref[0, 0]
    out = jnp.where(out >= 0.0, out, alpha * out)              # PReLU
    out_ref[0] = out.astype(out_ref.dtype)                     # single full-block store


def gcn_forward(seq, adj, W, bias, alpha, *, block_rows=None):
    """Pallas implementation of GCN.forward (dense path).

    seq: (B, N, in_ft); adj: (B, N, N); W: (out_ft, in_ft);
    bias: (out_ft,) or (1, out_ft); alpha: scalar / (1,1) PReLU slope.
    Returns: (B, N, out_ft) float32.
    """
    B, N, in_ft = seq.shape
    out_ft = W.shape[0]

    bias2d = jnp.asarray(bias).reshape(1, out_ft)
    alpha2d = jnp.asarray(alpha, dtype=jnp.float32).reshape(1, 1)

    if block_rows is None:
        # Tile the output rows only when N is large; pick the largest clean tile.
        block_rows = N
        if N > 1024:
            for t in (1024, 512, 256, 128):
                if N % t == 0:
                    block_rows = t
                    break
    n_row_tiles = pl.cdiv(N, block_rows)

    # Keep bf16 activations bf16 in the scratch (half VMEM, native bf16 MXU op).
    fts_dtype = seq.dtype if seq.dtype == jnp.bfloat16 else jnp.float32

    # Size the VMEM limit from the actual working set (double-buffered tiles).
    def _bytes(dt):
        return jnp.dtype(dt).itemsize
    est = (N * out_ft * _bytes(fts_dtype)                    # fts scratch
           + 2 * block_rows * N * _bytes(adj.dtype)          # adj tile (x2 bufs)
           + 2 * N * in_ft * _bytes(seq.dtype)               # seq block (x2 bufs)
           + 2 * block_rows * out_ft * 4                     # out tile  (x2 bufs)
           + 2 * out_ft * in_ft * _bytes(W.dtype)            # W
           + (1 << 20))                                      # slack
    vmem_limit = int(min(110 * 1024 * 1024,
                         max(int(est * 1.25), 32 * 1024 * 1024)))

    w_spec = pl.BlockSpec((out_ft, in_ft), lambda b, i: (0, 0))
    bias_spec = pl.BlockSpec((1, out_ft), lambda b, i: (0, 0))
    alpha_spec = pl.BlockSpec(memory_space=pltpu.MemorySpace.SMEM)
    seq_spec = pl.BlockSpec((1, N, in_ft), lambda b, i: (b, 0, 0))
    adj_spec = pl.BlockSpec((1, block_rows, N), lambda b, i: (b, i, 0))
    out_spec = pl.BlockSpec((1, block_rows, out_ft), lambda b, i: (b, i, 0))

    return pl.pallas_call(
        _gcn_kernel,
        out_shape=jax.ShapeDtypeStruct((B, N, out_ft), jnp.float32),
        grid_spec=pltpu.PrefetchScalarGridSpec(
            num_scalar_prefetch=0,
            grid=(B, n_row_tiles),
            in_specs=[w_spec, bias_spec, alpha_spec, seq_spec, adj_spec],
            out_specs=out_spec,
            scratch_shapes=[pltpu.VMEM((N, out_ft), fts_dtype)],
        ),
        compiler_params=pltpu.CompilerParams(
            dimension_semantics=("parallel", "arbitrary"),
            vmem_limit_bytes=vmem_limit),
    )(W, bias2d, alpha2d, seq, adj)


def _reference(seq, adj, W, bias, alpha):
    # Mirrors torch: fc(seq) -> bmm(adj, .) -> +bias -> PReLU(scalar alpha)
    fts = jnp.einsum("bni,oi->bno", seq, W)
    out = jnp.einsum("bnm,bmo->bno", adj, fts) + bias.reshape(-1)
    return jnp.where(out >= 0.0, out, jnp.float32(alpha) * out)


if __name__ == "__main__":
    B, N, in_ft, out_ft = 2, 8, 16, 32

    key = jax.random.PRNGKey(0)
    k_seq, k_adj, k_w = jax.random.split(key, 3)

    seq = jax.random.normal(k_seq, (B, N, in_ft), dtype=jnp.float32)
    adj = jax.random.uniform(k_adj, (B, N, N), dtype=jnp.float32)
    # Row-normalize adj (typical GCN usage; value choice doesn't affect the check).
    adj = adj / jnp.sum(adj, axis=-1, keepdims=True)

    # Deterministic xavier_uniform for the Linear weight (out_ft, in_ft).
    bound = (6.0 / (in_ft + out_ft)) ** 0.5
    W = jax.random.uniform(k_w, (out_ft, in_ft), dtype=jnp.float32,
                           minval=-bound, maxval=bound)
    bias = jnp.zeros((out_ft,), dtype=jnp.float32)       # bias.data.fill_(0.0)
    alpha = jnp.float32(0.25)                            # PReLU default slope

    out = gcn_forward(seq, adj, W, bias, alpha)
    out = jax.block_until_ready(out)

    ref = _reference(seq, adj, W, bias, alpha)
    assert out.shape == (B, N, out_ft)
    assert jnp.allclose(out, ref, atol=1e-5, rtol=1e-5)

    print("KERNEL_OK")
</pallas_src>

<mosaic_0001>
module attributes {stable_mosaic.version = 11 : i64} {
  func.func @_gcn_kernel(%arg0: i32, %arg1: i32, %arg2: memref<32x16xf32, #tpu.memory_space<vmem>>, %arg3: memref<1x32xf32, #tpu.memory_space<vmem>>, %arg4: memref<1x1xf32, #tpu.memory_space<smem>>, %arg5: memref<1x8x16xf32, #tpu.memory_space<vmem>>, %arg6: memref<1x8x8xf32, #tpu.memory_space<vmem>>, %arg7: memref<1x8x32xf32, #tpu.memory_space<vmem>>, %arg8: memref<8x32xf32, #tpu.memory_space<vmem>>) attributes {dimension_semantics = [#tpu.dimension_semantics<parallel>, #tpu.dimension_semantics<arbitrary>], iteration_bounds = array<i64: 2, 1>, scalar_prefetch = 0 : i64, scratch_operands = 1 : i64, tpu.core_type = #tpu.core_type<tc>, window_params = [{pipeline_mode = #tpu.pipeline_mode<synchronous>, transform_indices = @transform_0, window_bounds = array<i64: 32, 16>}, {pipeline_mode = #tpu.pipeline_mode<synchronous>, transform_indices = @transform_1, window_bounds = array<i64: 1, 32>}, {transform_indices = @transform_2, window_bounds = array<i64: 1, 1>}, {transform_indices = @transform_3, window_bounds = array<i64: 1, 8, 16>}, {transform_indices = @transform_4, window_bounds = array<i64: 1, 8, 8>}, {transform_indices = @transform_5, window_bounds = array<i64: 1, 8, 32>}]} {
    %c0_i32 = arith.constant 0 : i32
    %0 = arith.cmpi eq, %arg1, %c0_i32 : i32
    %1 = arith.extui %0 : i1 to i32
    %c0_i32_0 = arith.constant 0 : i32
    %2 = arith.cmpi ne, %1, %c0_i32_0 : i32
    scf.if %2 {
      %c0_13 = arith.constant 0 : index
      %c0_14 = arith.constant 0 : index
      %c0_15 = arith.constant 0 : index
      %19 = vector.load %arg5[%c0_13, %c0_14, %c0_15] : memref<1x8x16xf32, #tpu.memory_space<vmem>>, vector<1x8x16xf32>
      %20 = vector.shape_cast %19 : vector<1x8x16xf32> to vector<8x16xf32>
      %c0_16 = arith.constant 0 : index
      %c0_17 = arith.constant 0 : index
      %21 = vector.load %arg2[%c0_16, %c0_17] : memref<32x16xf32, #tpu.memory_space<vmem>>, vector<32x16xf32>
      %cst_18 = arith.constant dense<0.000000e+00> : vector<8x32xf32>
      %22 = tpu.matmul %20, %21, %cst_18 {dimension_numbers = #tpu.dot_dimension_numbers<[1], [1], [0], [0], [0, 0, 1, 0], [], []>} : vector<8x16xf32>, vector<32x16xf32>, vector<8x32xf32> -> vector<8x32xf32>
      %c0_19 = arith.constant 0 : index
      %c0_20 = arith.constant 0 : index
      %23 = vector.load %arg8[%c0_19, %c0_20] : memref<8x32xf32, #tpu.memory_space<vmem>>, vector<8x32xf32>
      tpu.vector_store %arg8[%c0_19, %c0_20], %22 {strides = array<i32>} : memref<8x32xf32, #tpu.memory_space<vmem>>, vector<8x32xf32>,
    } else {
    }
    %c0 = arith.constant 0 : index
    %c0_1 = arith.constant 0 : index
    %c0_2 = arith.constant 0 : index
    %3 = vector.load %arg6[%c0, %c0_1, %c0_2] : memref<1x8x8xf32, #tpu.memory_space<vmem>>, vector<1x8x8xf32>
    %4 = vector.shape_cast %3 : vector<1x8x8xf32> to vector<8x8xf32>
    %c0_3 = arith.constant 0 : index
    %c0_4 = arith.constant 0 : index
    %5 = vector.load %arg8[%c0_3, %c0_4] : memref<8x32xf32, #tpu.memory_space<vmem>>, vector<8x32xf32>
    %cst = arith.constant dense<0.000000e+00> : vector<8x32xf32>
    %6 = tpu.matmul %4, %5, %cst {dimension_numbers = #tpu.dot_dimension_numbers<[1], [0], [0], [1], [0, 0, 1, 1], [], []>} : vector<8x8xf32>, vector<8x32xf32>, vector<8x32xf32> -> vector<8x32xf32>
    %c0_5 = arith.constant 0 : index
    %c0_6 = arith.constant 0 : index
    %7 = vector.load %arg3[%c0_5, %c0_6] : memref<1x32xf32, #tpu.memory_space<vmem>>, vector<1x32xf32>
    %8 = vector.broadcast %7 : vector<1x32xf32> to vector<8x32xf32>
    %9 = arith.addf %6, %8 : vector<8x32xf32>
    %c0_7 = arith.constant 0 : index
    %c0_8 = arith.constant 0 : index
    %10 = memref.load %arg4[%c0_7, %c0_8] : memref<1x1xf32, #tpu.memory_space<smem>>
    %cst_9 = arith.constant 0.000000e+00 : f32
    %11 = vector.broadcast %cst_9 : f32 to vector<8x32xf32>
    %12 = arith.cmpf oge, %9, %11 : vector<8x32xf32>
    %13 = vector.broadcast %10 : f32 to vector<8x32xf32>
    %14 = arith.mulf %13, %9 : vector<8x32xf32>
    %15 = arith.select %12, %9, %14 : vector<8x32xi1>, vector<8x32xf32>
    %c0_10 = arith.constant 0 : index
    %c0_11 = arith.constant 0 : index
    %c0_12 = arith.constant 0 : index
    %16 = vector.load %arg7[%c0_10, %c0_11, %c0_12] : memref<1x8x32xf32, #tpu.memory_space<vmem>>, vector<1x8x32xf32>
    %17 = vector.shape_cast %16 : vector<1x8x32xf32> to vector<8x32xf32>
    %18 = vector.shape_cast %15 : vector<8x32xf32> to vector<1x8x32xf32>
    tpu.vector_store %arg7[%c0_10, %c0_11, %c0_12], %18 {strides = array<i32>} : memref<1x8x32xf32, #tpu.memory_space<vmem>>, vector<1x8x32xf32>,
    return
  }
  func.func @transform_0(%arg0: i32, %arg1: i32) -> (i32, i32) {
    %c0_i32 = arith.constant 0 : i32
    %c0_i32_0 = arith.constant 0 : i32
    %c0_i32_1 = arith.constant 0 : i32
    return %c0_i32, %c0_i32_0 : i32, i32
  }
  func.func @transform_1(%arg0: i32, %arg1: i32) -> (i32, i32) {
    %c0_i32 = arith.constant 0 : i32
    %c0_i32_0 = arith.constant 0 : i32
    %c0_i32_1 = arith.constant 0 : i32
    return %c0_i32, %c0_i32_0 : i32, i32
  }
  func.func @transform_2(%arg0: i32, %arg1: i32) -> (i32, i32) {
    %c0_i32 = arith.constant 0 : i32
    %c0_i32_0 = arith.constant 0 : i32
    %c0_i32_1 = arith.constant 0 : i32
    return %c0_i32, %c0_i32_0 : i32, i32
  }
  func.func @transform_3(%arg0: i32, %arg1: i32) -> (i32, i32, i32) {
    %c0_i32 = arith.constant 0 : i32
    %c0_i32_0 = arith.constant 0 : i32
    %c0_i32_1 = arith.constant 0 : i32
    return %arg0, %c0_i32, %c0_i32_0 : i32, i32, i32
  }
  func.func @transform_4(%arg0: i32, %arg1: i32) -> (i32, i32, i32) {
    %c0_i32 = arith.constant 0 : i32
    %c0_i32_0 = arith.constant 0 : i32
    return %arg0, %arg1, %c0_i32 : i32, i32, i32
  }
  func.func @transform_5(%arg0: i32, %arg1: i32) -> (i32, i32, i32) {
    %c0_i32 = arith.constant 0 : i32
    %c0_i32_0 = arith.constant 0 : i32
    return %arg0, %arg1, %c0_i32 : i32, i32, i32
  }
}

</mosaic_0001>

<llo_original>
// kernel: tpu_custom_call.1
$region0: #{tpu_custom_call.1}
  #allocation0 [shape = 'u32[]', space=smem, size = 0x4, offset = 0x4, fixed_abs, tag = 'smem constant byte address 0x4 - core index']
  #allocation1 [shape = 'u32[72,128]{1,0:T(1,128)}', space=vmem, size = 0x9000, scoped, tag = 'internal scratch']
  #allocation2 [shape = 'f32[8,32]{1,0:T(8,128)}', space=vmem, size = 0x1000, scoped, tag = 'scratch operand']
  #allocation3 [shape = 'f32[1,1]{1,0:T(1,128)S(6)}', space=smem, size = 0x200, scoped, tag = 'scoped memory for tpu_custom_call.1']
  %s0 = inlined_call_operand.vmem [shape: f32[32,16], index: 0, kind: input, shape index: {}]
  %s1 = inlined_call_operand.vmem [shape: f32[1,32], index: 1, kind: input, shape index: {}]
  %s2 = inlined_call_operand.<no memory space> [shape: f32[1,1], index: 2, kind: input, shape index: {}]
  %s3 = inlined_call_operand.vmem [shape: f32[2,8,16], index: 3, kind: input, shape index: {}]
  %s4 = inlined_call_operand.vmem [shape: f32[2,8,8], index: 4, kind: input, shape index: {}]
  %s5 = inlined_call_operand.hbm [shape: f32[2,8,32], index: 5, kind: output, shape index: {}]
  %s6 = sld [smem:[#allocation0]]
  $region57: #{tpu_custom_call.1} parent=0
    _
  %s8 = ssub.s32 1, %s6
  %s9 = scalar_select 0, %s8, %s6
  %10 = sst [smem:[#allocation3]] %s2
  $region1: #{tpu_custom_call.1} parent=0
    #allocation4 [shape = 'u8[8192]{0}', space=vmem, size = 0x2000, scoped, tag = 'output window, operand 0']
    #allocation5 [shape = 's32[2]{0}', space=sflag, size = 0x8, scoped, tag = 'scoped memory for tpu_custom_call.1']
    %11 = vsyncpa [#allocation5], 0
    %s12 = scalar_lea.sflag [#allocation5], 1
    %13 = vsyncpa %s12, 0
    loop: start=0, step=1, limit=4
    $region2: #{tpu_custom_call.1} parent=1 // loop_pre_header
      _
    $region3: #{tpu_custom_call.1} parent=1 // loop_header
      %s15 = sphi 0, %s19
      %p16 = scmp.ge.s32.totalorder %s15, 4
      %s22 = sphi 0, %s34
      %s23 = sphi 0, %s30
      %s24 = sphi 0, %s22
      %s25 = sphi 0, %s23
      %s26 = sphi 0, %s24
      %s27 = sphi 0, %s25
      %s35 = sphi 0, %s35
      %s37 = sphi 0, %s35
      %s38 = sphi 0, %s37
      %s52 = sphi 0, %s38
      %s56 = sphi 0, %s56
      %s58 = sphi 0, %s56
      %s59 = sphi 0, %s58
      %s73 = sphi 0, %s59
      %s77 = sphi 0, %s77
      %s79 = sphi 0, %s77
      %s80 = sphi 0, %s79
      %s94 = sphi 0, %s80
      %s100 = sphi 0, %s102
      %s103 = sphi 0, %s100
      %s104 = sphi 0, %s103
      %s120 = sphi 0, %s104
      %s128 = sphi 0, %s130
      %s131 = sphi 0, %s128
      %s132 = sphi 0, %s131
      %s148 = sphi 0, %s132
      %s156 = sphi 0, %s158
      %s159 = sphi 0, %s156
      %s160 = sphi 0, %s159
      %s176 = sphi 0, %s160
    $region4: #{tpu_custom_call.1} parent=1 // loop_header_branch
      %18 = sbr.rel (%p16) target = $region8
    $region5: #{tpu_custom_call.1} parent=1 // loop_body
      %s20 = ssub.s32 %s15, 1
      %s21 = ssub.s32 %s15, 2
      %s28 = sadd.s32 1, %s23
      %p29 = scmp.ge.s32.totalorder %s28, 1
      %s30 = scalar_select %p29, 0, %s28
      %s31 = sadd.s32 1, %s22
      %s32 = scalar_select %p29, %s31, %s22
      %p33 = scmp.ge.s32.totalorder %s32, 2
      %s34 = scalar_select %p33, 0, %s32
      %s36 = sadd.s32 %s35, 1
      %p39 = scmp.eq.s32.totalorder %s15, 1
      %p40 = scmp.ne.s32.totalorder %s35, %s37
      %p41 = scmp.eq.s32.totalorder %s15, 0
      %p42 = por %p40, %p41
      %p43 = scmp.ne.s32.totalorder %s35, %s37
      %p44 = scmp.eq.s32.totalorder %s20, 1
      %p45 = por %p43, %p44
      %p46 = scmp.ne.s32.totalorder %s37, %s38
      %p47 = scmp.eq.s32.totalorder %s20, 0
      %p48 = por %p46, %p47
      %p49 = scmp.ne.s32.totalorder %s37, %s38
      %p50 = scmp.eq.s32.totalorder %s21, 1
      %p51 = por %p49, %p50
      %p53 = scmp.ne.s32.totalorder %s38, %s52
      %p54 = scmp.eq.s32.totalorder %s21, 0
      %p55 = por %p53, %p54
      %s57 = sadd.s32 %s56, 1
      %p60 = scmp.eq.s32.totalorder %s15, 1
      %p61 = scmp.ne.s32.totalorder %s56, %s58
      %p62 = scmp.eq.s32.totalorder %s15, 0
      %p63 = por %p61, %p62
      %p64 = scmp.ne.s32.totalorder %s56, %s58
      %p65 = scmp.eq.s32.totalorder %s20, 1
      %p66 = por %p64, %p65
      %p67 = scmp.ne.s32.totalorder %s58, %s59
      %p68 = scmp.eq.s32.totalorder %s20, 0
      %p69 = por %p67, %p68
      %p70 = scmp.ne.s32.totalorder %s58, %s59
      %p71 = scmp.eq.s32.totalorder %s21, 1
      %p72 = por %p70, %p71
      %p74 = scmp.ne.s32.totalorder %s59, %s73
      %p75 = scmp.eq.s32.totalorder %s21, 0
      %p76 = por %p74, %p75
      %s78 = sadd.s32 %s77, 1
      %p81 = scmp.eq.s32.totalorder %s15, 1
      %p82 = scmp.ne.s32.totalorder %s77, %s79
      %p83 = scmp.eq.s32.totalorder %s15, 0
      %p84 = por %p82, %p83
      %p85 = scmp.ne.s32.totalorder %s77, %s79
      %p86 = scmp.eq.s32.totalorder %s20, 1
      %p87 = por %p85, %p86
      %p88 = scmp.ne.s32.totalorder %s79, %s80
      %p89 = scmp.eq.s32.totalorder %s20, 0
      %p90 = por %p88, %p89
      %p91 = scmp.ne.s32.totalorder %s79, %s80
      %p92 = scmp.eq.s32.totalorder %s21, 1
      %p93 = por %p91, %p92
      %p95 = scmp.ne.s32.totalorder %s80, %s94
      %p96 = scmp.eq.s32.totalorder %s21, 0
      %p97 = por %p95, %p96
      %s98 = ssub.s32 %s22, %s34
      %p99 = scmp.eq.s32.totalorder %s98, 0
      %s101 = sadd.s32 %s100, 1
      %s102 = scalar_select %p99, %s100, %s101
      %p105 = pneg %p99
      %p106 = scmp.eq.s32.totalorder %s15, 1
      %p107 = por %p105, %p106
      %p108 = scmp.ne.s32.totalorder %s100, %s103
      %p109 = scmp.eq.s32.totalorder %s15, 0
      %p110 = por %p108, %p109
      %p111 = scmp.ne.s32.totalorder %s100, %s103
      %p112 = scmp.eq.s32.totalorder %s20, 1
      %p113 = por %p111, %p112
      %p114 = scmp.ne.s32.totalorder %s103, %s104
      %p115 = scmp.eq.s32.totalorder %s20, 0
      %p116 = por %p114, %p115
      %p117 = scmp.ne.s32.totalorder %s103, %s104
      %p118 = scmp.eq.s32.totalorder %s21, 1
      %p119 = por %p117, %p118
      %p121 = scmp.ne.s32.totalorder %s104, %s120
      %p122 = scmp.eq.s32.totalorder %s21, 0
      %p123 = por %p121, %p122
      %s124 = ssub.s32 %s22, %s34
      %s125 = ssub.s32 %s23, %s30
      %s126 = sor.u32 %s124, %s125
      %p127 = scmp.eq.s32.totalorder %s126, 0
      %s129 = sadd.s32 %s128, 1
      %s130 = scalar_select %p127, %s128, %s129
      %p133 = pneg %p127
      %p134 = scmp.eq.s32.totalorder %s15, 1
      %p135 = por %p133, %p134
      %p136 = scmp.ne.s32.totalorder %s128, %s131
      %p137 = scmp.eq.s32.totalorder %s15, 0
      %p138 = por %p136, %p137
      %p139 = scmp.ne.s32.totalorder %s128, %s131
      %p140 = scmp.eq.s32.totalorder %s20, 1
      %p141 = por %p139, %p140
      %p142 = scmp.ne.s32.totalorder %s131, %s132
      %p143 = scmp.eq.s32.totalorder %s20, 0
      %p144 = por %p142, %p143
      %p145 = scmp.ne.s32.totalorder %s131, %s132
      %p146 = scmp.eq.s32.totalorder %s21, 1
      %p147 = por %p145, %p146
      %p149 = scmp.ne.s32.totalorder %s132, %s148
      %p150 = scmp.eq.s32.totalorder %s21, 0
      %p151 = por %p149, %p150
      %s152 = ssub.s32 %s22, %s34
      %s153 = ssub.s32 %s23, %s30
      %s154 = sor.u32 %s152, %s153
      %p155 = scmp.eq.s32.totalorder %s154, 0
      %s157 = sadd.s32 %s156, 1
      %s158 = scalar_select %p155, %s156, %s157
      %p161 = pneg %p155
      %p162 = scmp.eq.s32.totalorder %s15, 1
      %p163 = por %p161, %p162
      %p164 = scmp.ne.s32.totalorder %s156, %s159
      %p165 = scmp.eq.s32.totalorder %s15, 0
      %p166 = por %p164, %p165
      %p167 = scmp.ne.s32.totalorder %s156, %s159
      %p168 = scmp.eq.s32.totalorder %s20, 1
      %p169 = por %p167, %p168
      %p170 = scmp.ne.s32.totalorder %s159, %s160
      %p171 = scmp.eq.s32.totalorder %s20, 0
      %p172 = por %p170, %p171
      %p173 = scmp.ne.s32.totalorder %s159, %s160
      %p174 = scmp.eq.s32.totalorder %s21, 1
      %p175 = por %p173, %p174
      %p177 = scmp.ne.s32.totalorder %s160, %s176
      %p178 = scmp.eq.s32.totalorder %s21, 0
      %p179 = por %p177, %p178
      %p180 = scmp.le.s32.totalorder 1, %s15
      %p181 = scmp.lt.s32.totalorder %s15, 3
      %p182 = pnand %p180, %p181
      %p183 = pneg %p182
      // Predicated region
      $region9: #{tpu_custom_call.1} parent=5 // pred_check
        _
      $region10: #{tpu_custom_call.1} parent=5 // pred_check_branch
        %185 = sbr.rel (%p182) target = $region12
      $region11: #{tpu_custom_call.1} parent=5 // pred_region
        %s186 = ssub.s32 %s15, 1
        // Predicated region
        $region13: #{tpu_custom_call.1} parent=11 // pred_check
          %p187 = pneg %p48
        $region14: #{tpu_custom_call.1} parent=11 // pred_check_branch
          %189 = sbr.rel (%p187) target = $region16
        $region15: #{tpu_custom_call.1} parent=11 // pred_region
          _
        $region16: #{tpu_custom_call.1} parent=11 // pred_fallthru
          _
        // Predicated region
        $region17: #{tpu_custom_call.1} parent=11 // pred_check
          %p190 = pneg %p69
        $region18: #{tpu_custom_call.1} parent=11 // pred_check_branch
          %192 = sbr.rel (%p190) target = $region20
        $region19: #{tpu_custom_call.1} parent=11 // pred_region
          _
        $region20: #{tpu_custom_call.1} parent=11 // pred_fallthru
          _
        // Predicated region
        $region21: #{tpu_custom_call.1} parent=11 // pred_check
          %p193 = pneg %p90
        $region22: #{tpu_custom_call.1} parent=11 // pred_check_branch
          %195 = sbr.rel (%p193) target = $region24
        $region23: #{tpu_custom_call.1} parent=11 // pred_region
          _
        $region24: #{tpu_custom_call.1} parent=11 // pred_fallthru
          _
      $region12: #{tpu_custom_call.1} parent=5 // pred_fallthru
        _
      %p196 = scmp.lt.s32.totalorder %s15, 2
      // Predicated region
      $region25: #{tpu_custom_call.1} parent=5 // pred_check
        %p197 = pneg %p196
      $region26: #{tpu_custom_call.1} parent=5 // pred_check_branch
        %199 = sbr.rel (%p197) target = $region28
      $region27: #{tpu_custom_call.1} parent=5 // pred_region
        // Predicated region
        $region29: #{tpu_custom_call.1} parent=27 // pred_check
          %p200 = pneg %p110
        $region30: #{tpu_custom_call.1} parent=27 // pred_check_branch
          %202 = sbr.rel (%p200) target = $region32
        $region31: #{tpu_custom_call.1} parent=27 // pred_region
          %p203 = scmp.lt.s32.totalorder %s22, 1
          %s204 = scalar_select %p203, %s22, 1
          %s205 = smul.addr %s204, 8
          %s206 = scalar_lea.vmem %s3, %s205
        $region32: #{tpu_custom_call.1} parent=27 // pred_fallthru
          _
        // Predicated region
        $region33: #{tpu_custom_call.1} parent=27 // pred_check
          %p207 = pneg %p138
        $region34: #{tpu_custom_call.1} parent=27 // pred_check_branch
          %209 = sbr.rel (%p207) target = $region36
        $region35: #{tpu_custom_call.1} parent=27 // pred_region
          %p210 = scmp.lt.s32.totalorder %s22, 1
          %s211 = scalar_select %p210, %s22, 1
          %p212 = scmp.lt.s32.totalorder %s23, 0
          %s213 = scalar_select %p212, %s23, 0
          %s214 = sadd.s32 %s213, %s211
          %s215 = smul.addr %s214, 8
          %s216 = scalar_lea.vmem %s4, %s215
        $region36: #{tpu_custom_call.1} parent=27 // pred_fallthru
          _
      $region28: #{tpu_custom_call.1} parent=5 // pred_fallthru
        _
      %p217 = scmp.le.s32.totalorder 1, %s15
      %p218 = scmp.lt.s32.totalorder %s15, 3
      %p219 = pnand %p217, %p218
      %p220 = pneg %p219
      // Predicated region
      $region37: #{tpu_custom_call.1} parent=5 // pred_check
        _
      $region38: #{tpu_custom_call.1} parent=5 // pred_check_branch
        %222 = sbr.rel (%p219) target = $region40
      $region39: #{tpu_custom_call.1} parent=5 // pred_region
        %s223 = ssub.s32 %s15, 1
        %p224 = pneg %p48
        %p225 = pneg %p45
        %p226 = pneg %p69
        %p227 = pneg %p66
        %p228 = pneg %p90
        %p229 = pneg %p87
        %p230 = scmp.lt.s32.totalorder %s24, 1
        %s231 = scalar_select %p230, %s24, 1
        %s232 = smul.addr %s231, 8
        %s233 = scalar_lea.vmem %s3, %s232
        %p234 = pneg %p116
        %p235 = pneg %p113
        %p236 = scmp.lt.s32.totalorder %s24, 1
        %s237 = scalar_select %p236, %s24, 1
        %p238 = scmp.lt.s32.totalorder %s25, 0
        %s239 = scalar_select %p238, %s25, 0
        %s240 = sadd.s32 %s239, %s237
        %s241 = smul.addr %s240, 8
        %s242 = scalar_lea.vmem %s4, %s241
        %p243 = pneg %p144
        %p244 = pneg %p141
        %p245 = pneg %p172
        %p246 = pneg %p169
        %s247 = sand.u32 %s159, 1
        %s248 = scalar_lea.sflag [#allocation5], %s247
        %s249 = sand.u32 %s159, 1
        %s250 = smul.addr %s249, 8
        %s251 = scalar_lea.vmem [#allocation4], %s250
        %p252 = scmp.lt.s32.totalorder %s24, 1
        %s253 = scalar_select %p252, %s24, 1
        %s254 = smul.addr %s253, 8
        %s255 = scalar_lea.vmem %s3, %s254
        %p256 = scmp.lt.s32.totalorder %s24, 1
        %s257 = scalar_select %p256, %s24, 1
        %p258 = scmp.lt.s32.totalorder %s25, 0
        %s259 = scalar_select %p258, %s25, 0
        %s260 = sadd.s32 %s259, %s257
        %s261 = smul.addr %s260, 8
        %s262 = scalar_lea.vmem %s4, %s261
        %p263 = scmp.eq.s32.totalorder %s25, 0
        // Predicated region
        $region41: #{tpu_custom_call.1} parent=39 // pred_check
          %p264 = pneg %p263
        $region42: #{tpu_custom_call.1} parent=39 // pred_check_branch
          %266 = sbr.rel (%p264) target = $region44
        $region43: #{tpu_custom_call.1} parent=39 // pred_region
          %v267 = vld [vmem:[%s255] sm:$0xff]
          %v268 = vld [vmem:[%s0] sm:$0xff]
          %v269 = vld [vmem:[%s0 + $0x8] sm:$0xff]
          %v270 = vld [vmem:[%s0 + $0x10] sm:$0xff]
          %v271 = vld [vmem:[%s0 + $0x18] sm:$0xff]
          %vm272 = vcmask 130048
          %v274 = vsel %vm272, %v267, 0
          %v277 = vsel %vm272, %v268, 0
          %v280 = vsel %vm272, %v269, 0
          %v283 = vsel %vm272, %v270, 0
          %v286 = vsel %vm272, %v271, 0
          %288 = vmatpush.xpose.msra.mxu0 0.0
          %289 = vmatpush.xpose.msra.mxu0 0.0
          %290 = vmatpush.xpose.msra.mxu0 0.0
          %291 = vmatpush.xpose.msra.mxu0 0.0
          %292 = vmatpush.xpose.msra.mxu0 0.0
          %293 = vmatpush.xpose.msra.mxu0 0.0
          %294 = vmatpush.xpose.msra.mxu0 0.0
          %295 = vmatpush.xpose.msra.mxu0 0.0
          %296 = vmatpush.xpose.msra.mxu0 0.0
          %297 = vmatpush.xpose.msra.mxu0 0.0
          %298 = vmatpush.xpose.msra.mxu0 0.0
          %299 = vmatpush.xpose.msra.mxu0 0.0
          %300 = vmatpush.xpose.msra.mxu0 %v286
          %301 = vmatpush.xpose.msra.mxu0 %v283
          %302 = vmatpush.xpose.msra.mxu0 %v280
          %303 = vmatpush.xpose.msra.mxu0 %v277
          %304 = vmatmul.f32.gmra.mxu0 %v274
          %v305 = vpop.f32.mrf.mxu0
          %v306 = vadd.f32 0.0, %v305
          %307 = vdwg.mxu0
          %vm308 = vcmask 261120
          %309 = vst.msk [vmem:[#allocation2] sm:$0xff] %vm308, %v306
        $region44: #{tpu_custom_call.1} parent=39 // pred_fallthru
          _
        %v310 = vld [vmem:[%s262] sm:$0xff]
        %v311 = vld [vmem:[#allocation2] sm:$0xff]
        %v312 = vld [vmem:[%s1] sm:$0x1]
        %v314 = vperm.slane %v312, 0
        %vm316 = vcmask 64512
        %v318 = vsel %vm316, %v310, 0
        %320 = vmatpush.msra.mxu0 0.0
        %321 = vmatpush.msra.mxu0 0.0
        %322 = vmatpush.msra.mxu0 0.0
        %323 = vmatpush.msra.mxu0 0.0
        %324 = vmatpush.msra.mxu0 0.0
        %325 = vmatpush.msra.mxu0 0.0
        %326 = vmatpush.msra.mxu0 0.0
        %327 = vmatpush.msra.mxu0 0.0
        %328 = vmatpush.msra.mxu0 0.0
        %329 = vmatpush.msra.mxu0 0.0
        %330 = vmatpush.msra.mxu0 0.0
        %331 = vmatpush.msra.mxu0 0.0
        %332 = vmatpush.msra.mxu0 0.0
        %333 = vmatpush.msra.mxu0 0.0
        %334 = vmatpush.msra.mxu0 0.0
        %335 = vmatpush.msra.mxu0 %v311
        %336 = vmatmul.f32.gmra.mxu0 %v318
        %v337 = vpop.f32.mrf.mxu0
        %v338 = vadd.f32 %v314, %v337
        %339 = vdwg.mxu0
        %s340 = sld [smem:[#allocation3]]
        %vm341 = vcmp.ge.f32.partialorder %v338, 0.0
        %v342 = vstv %s340
        %v343 = vmul.f32 %v342, %v338
        %v344 = vsel %vm341, %v338, %v343
        %vm345 = vcmask 261120
        %346 = vst.msk [vmem:[%s251] sm:$0xff] %vm345, %v344
        %s347 = sand.u32 %s159, 1
        %s348 = scalar_lea.sflag [#allocation5], %s347
        %s349 = sand.u32 %s159, 1
        %s350 = smul.addr %s349, 8
        %s351 = scalar_lea.vmem [#allocation4], %s350
        // Predicated region
        $region45: #{tpu_custom_call.1} parent=39 // pred_check
          %p352 = pneg %p169
        $region46: #{tpu_custom_call.1} parent=39 // pred_check_branch
          %354 = sbr.rel (%p352) target = $region48
        $region47: #{tpu_custom_call.1} parent=39 // pred_region
          %356 = vsyncadd %s348, 0
          %s357 = sadd.s32 %s25, %s24
          %s358 = smul.addr %s357, 8
          %s359 = scalar_lea.hbm %s5, %s358
          %s361 = sshll.u32 %s351, 4
          %s362 = int_to_ptr.vmem [resolvable:$true] %s361
          %s363 = sshll.u32 %s359, 4
          %s364 = int_to_ptr.hbm [resolvable:$true] %s363
          %366 = dma.vmem_to_hbm [thread:$0]  %s362, 128, %s364, %s348
        $region48: #{tpu_custom_call.1} parent=39 // pred_fallthru
          _
      $region40: #{tpu_custom_call.1} parent=5 // pred_fallthru
        _
      %p367 = scmp.le.s32.totalorder 2, %s15
      // Predicated region
      $region49: #{tpu_custom_call.1} parent=5 // pred_check
        %p368 = pneg %p367
      $region50: #{tpu_custom_call.1} parent=5 // pred_check_branch
        %370 = sbr.rel (%p368) target = $region52
      $region51: #{tpu_custom_call.1} parent=5 // pred_region
        %s371 = ssub.s32 %s15, 2
        // Predicated region
        $region53: #{tpu_custom_call.1} parent=51 // pred_check
          %p372 = pneg %p175
        $region54: #{tpu_custom_call.1} parent=51 // pred_check_branch
          %374 = sbr.rel (%p372) target = $region56
        $region55: #{tpu_custom_call.1} parent=51 // pred_region
          %s375 = sand.u32 %s160, 1
          %s376 = scalar_lea.sflag [#allocation5], %s375
          %s377 = sand.u32 %s160, 1
          %s378 = smul.addr %s377, 8
          %s379 = scalar_lea.vmem [#allocation4], %s378
          %381 = dma.done %s376, 128
        $region56: #{tpu_custom_call.1} parent=51 // pred_fallthru
          _
      $region52: #{tpu_custom_call.1} parent=5 // pred_fallthru
        _
    $region6: #{tpu_custom_call.1} parent=1 // loop_footer
      %s19 = sadd.s32 1, %s15
    $region7: #{tpu_custom_call.1} parent=1 // loop_footer_branch
      %14 = sbr.rel target = $region3
    $region8: #{tpu_custom_call.1} parent=1 // loop_exit
      _
    %382 = vsyncpa [#allocation5], 1
    %s383 = scalar_lea.sflag [#allocation5], 1
    %384 = vsyncpa %s383, 1

</llo_original>
